<compile_context>
chip_gen: v7x
topology: tpu7x:2x2x1
jax: 0.10.0
libtpu: 0.0.40
codegen_flags: <defaults>
</compile_context>

<pallas_src>
import functools

import jax
import jax.numpy as jnp
from jax.experimental import pallas as pl
from jax.experimental.pallas import tpu as pltpu

_LANE = 128
_SUBLANE = 8


def _round_up(n, m):
    return ((n + m - 1) // m) * m


def _pick_block_b(B):
    """Batch tile: 128 rows on v5e (4x128^2 MXU), up to 256 on v6e/v7x (2x256^2)."""
    try:
        kind = jax.devices()[0].device_kind.lower()
    except Exception:
        kind = ""
    max_tile = 128 if "v5" in kind else 256
    # TODO(synk): on v7x with B >= 16, prefer >=2 batch tiles
    # (block_b ~ round_up(cdiv(B, 2), 8)) so the "parallel" axis can split across
    # both TensorCores, once per-tile work outweighs duplicating resident weights.
    if B <= max_tile:
        return _round_up(B, _SUBLANE)
    return max_tile


def _vmem_limit_bytes(p, block_b, Dp, Hp, Ap):
    """Explicit scoped-VMEM budget: resident weights (1 buffer) + streamed tiles."""
    weight_bytes = sum(int(a.size) * a.dtype.itemsize for a in p.values())
    stream_bytes = 2 * block_b * (Dp + Ap) * 4      # x / q tiles, double-buffered
    carry_bytes = 4 * block_b * Hp * 4              # h0 in, h_out, scratch (+slack)
    est = weight_bytes + stream_bytes + carry_bytes
    return int(min(64 * 2 ** 20, max(16 * 2 ** 20, 2 * est)))


def rnn_agent_kernel(x_ref, h0_ref,
                     w1_ref, b1_ref, wih_ref, bih_ref, whh_ref, bhh_ref,
                     w2_ref, b2_ref,
                     q_ref, h_out_ref,
                     h_scr):
    """One GRU-agent step; grid = (batch_tiles, T), h carried in VMEM scratch."""
    t = pl.program_id(1)
    Hp = h_scr.shape[-1]                 # lane-padded hidden size

    # New batch tile: (re)load h0 into the VMEM carry.
    @pl.when(t == 0)
    def _():
        h_scr[...] = h0_ref[...]

    x = x_ref[...]                       # (block_b, Dp) f32
    h = h_scr[...]                       # (block_b, Hp) f32

    # fc1 + ReLU — bf16 operands on the MXU, f32 accumulation.
    x1 = jnp.dot(x.astype(w1_ref.dtype), w1_ref[...],
                 preferred_element_type=jnp.float32) + b1_ref[...]
    x1 = jnp.maximum(x1, 0.0)            # (block_b, Hp)

    # GRUCell (PyTorch semantics). Gates stacked along lanes as [r | z | n]
    # (each gate on its own 128-lane-aligned slab): 2 lane-wide matmuls.
    gi = jnp.dot(x1.astype(wih_ref.dtype), wih_ref[...],
                 preferred_element_type=jnp.float32) + bih_ref[...]   # (block_b, 3Hp)
    gh = jnp.dot(h.astype(whh_ref.dtype), whh_ref[...],
                 preferred_element_type=jnp.float32) + bhh_ref[...]   # (block_b, 3Hp)

    r = jax.nn.sigmoid(gi[:, 0 * Hp:1 * Hp] + gh[:, 0 * Hp:1 * Hp])
    z = jax.nn.sigmoid(gi[:, 1 * Hp:2 * Hp] + gh[:, 1 * Hp:2 * Hp])
    n = jnp.tanh(gi[:, 2 * Hp:3 * Hp] + r * gh[:, 2 * Hp:3 * Hp])
    h_new = (1.0 - z) * n + z * h        # all gate math in f32 (v5e-safe)

    # fc2 (N padded to 128 -> lane-dense store)
    q = jnp.dot(h_new.astype(w2_ref.dtype), w2_ref[...],
                preferred_element_type=jnp.float32) + b2_ref[...]

    q_ref[...] = q.astype(q_ref.dtype)
    h_scr[...] = h_new                   # carry stays resident in VMEM across t

    @pl.when(t == pl.num_programs(1) - 1)
    def _():
        h_out_ref[...] = h_new.astype(h_out_ref.dtype)


def _rnn_forward_padded(x_seq_p, h_p, p, block_b):
    """x_seq_p: (T, Bp, Dp) f32, h_p: (Bp, Hp) f32 -> (q (T,Bp,Ap) f32, h (Bp,Hp) f32)."""
    T, Bp, Dp = x_seq_p.shape
    Hp = h_p.shape[1]
    Ap = p["w2"].shape[1]
    grid = (Bp // block_b, T)

    # Grid-invariant weights/biases: resident in VMEM, single buffer (no pipelining).
    resident = pl.BlockSpec(memory_space=pltpu.MemorySpace.VMEM)

    return pl.pallas_call(
        rnn_agent_kernel,
        out_shape=(jax.ShapeDtypeStruct((T, Bp, Ap), jnp.float32),
                   jax.ShapeDtypeStruct((Bp, Hp), jnp.float32)),
        grid=grid,
        in_specs=[
            pl.BlockSpec((pl.Squeezed(), block_b, Dp), lambda i, t: (t, i, 0)),  # x_t
            pl.BlockSpec((block_b, Hp), lambda i, t: (i, 0)),                    # h0
            resident, resident,     # w1, b1
            resident, resident,     # wih, bih
            resident, resident,     # whh, bhh
            resident, resident,     # w2, b2
        ],
        out_specs=(
            pl.BlockSpec((pl.Squeezed(), block_b, Ap), lambda i, t: (t, i, 0)),  # q_t
            pl.BlockSpec((block_b, Hp), lambda i, t: (i, 0)),                    # h_T
        ),
        scratch_shapes=[pltpu.VMEM((block_b, Hp), jnp.float32)],                 # h carry
        compiler_params=pltpu.CompilerParams(
            dimension_semantics=("parallel", "arbitrary"),
            vmem_limit_bytes=_vmem_limit_bytes(p, block_b, Dp, Hp, Ap)),
    )(x_seq_p, h_p,
      p["w1"], p["b1"], p["wih"], p["bih"], p["whh"], p["bhh"],
      p["w2"], p["b2"])


def _pad_hidden(hidden_state, B, Bp, hidden_dim, Hp):
    """Accept either a logical (B, H) hidden state or an already-padded (Bp, Hp) one."""
    if hidden_state.ndim == 2 and hidden_state.shape == (Bp, Hp):
        return hidden_state.astype(jnp.float32)       # already padded: no re-pad/slice
    h_in = hidden_state.reshape(-1, hidden_dim)
    assert h_in.shape[0] == B, "hidden_state flattened batch must match inputs batch"
    return jnp.zeros((Bp, Hp), jnp.float32).at[:B, :hidden_dim].set(h_in)


@functools.partial(jax.jit, static_argnames=("hidden_dim", "n_actions", "return_padded_h"))
def rnn_agent_step(inputs, hidden_state, padded_params, *,
                   hidden_dim, n_actions, return_padded_h=False):
    """Single step matching RNNAgent.forward: returns (q, h)."""
    B, D = inputs.shape
    p = padded_params
    Dp, Hp = p["w1"].shape
    block_b = _pick_block_b(B)
    Bp = _round_up(B, block_b)

    x_p = jnp.zeros((1, Bp, Dp), jnp.float32).at[0, :B, :D].set(inputs)
    h_p = _pad_hidden(hidden_state, B, Bp, hidden_dim, Hp)

    q_seq_p, h_out_p = _rnn_forward_padded(x_p, h_p, p, block_b)
    q = q_seq_p[0, :B, :n_actions]
    h = h_out_p if return_padded_h else h_out_p[:B, :hidden_dim]
    return q, h


@functools.partial(jax.jit, static_argnames=("hidden_dim", "n_actions"))
def rnn_agent_rollout(inputs_seq, hidden_state, padded_params, *, hidden_dim, n_actions):
    """T-step rollout fused into ONE pallas_call; h never leaves VMEM between steps."""
    T, B, D = inputs_seq.shape
    p = padded_params
    Dp, Hp = p["w1"].shape
    block_b = _pick_block_b(B)
    Bp = _round_up(B, block_b)

    x_p = jnp.zeros((T, Bp, Dp), jnp.float32).at[:, :B, :D].set(inputs_seq)
    h_p = _pad_hidden(hidden_state, B, Bp, hidden_dim, Hp)

    q_seq_p, h_out_p = _rnn_forward_padded(x_p, h_p, p, block_b)
    return q_seq_p[:, :B, :n_actions], h_out_p[:B, :hidden_dim]


def init_params(key, input_shape, n_actions, hidden_dim):
    """Logical (unpadded) f32 params; weights transposed vs. PyTorch, gate order [r, z, n]."""
    ks = jax.random.split(key, 8)
    s = 0.1
    return {
        "w1": s * jax.random.normal(ks[0], (input_shape, hidden_dim), jnp.float32),
        "b1": s * jax.random.normal(ks[1], (hidden_dim,), jnp.float32),
        "wih": s * jax.random.normal(ks[2], (3, hidden_dim, hidden_dim), jnp.float32),
        "bih": s * jax.random.normal(ks[3], (3, hidden_dim), jnp.float32),
        "whh": s * jax.random.normal(ks[4], (3, hidden_dim, hidden_dim), jnp.float32),
        "bhh": s * jax.random.normal(ks[5], (3, hidden_dim), jnp.float32),
        "w2": s * jax.random.normal(ks[6], (hidden_dim, n_actions), jnp.float32),
        "b2": s * jax.random.normal(ks[7], (n_actions,), jnp.float32),
    }


def pad_params(p, weight_dtype=jnp.bfloat16):
    """One-time layout plumbing: lane-pad to 128, stack GRU gates as (Hp, 3*Hp),
    bf16 weights (f32 accumulation in-kernel), f32 biases. Pads are exact zeros,
    so padded lanes/rows of h provably stay zero across steps."""
    D, H = p["w1"].shape
    A = p["w2"].shape[1]
    Dp, Hp, Ap = _round_up(D, _LANE), _round_up(H, _LANE), _round_up(A, _LANE)

    def pad2(a, rows, cols, dtype):
        return jnp.zeros((rows, cols), dtype).at[:a.shape[0], :a.shape[1]].set(a.astype(dtype))

    wih = jnp.zeros((Hp, 3 * Hp), weight_dtype)
    whh = jnp.zeros((Hp, 3 * Hp), weight_dtype)
    bih = jnp.zeros((1, 3 * Hp), jnp.float32)
    bhh = jnp.zeros((1, 3 * Hp), jnp.float32)
    for g in range(3):  # [r, z, n] — each gate keeps its own 128-lane-aligned slab
        wih = wih.at[:H, g * Hp:g * Hp + H].set(p["wih"][g].astype(weight_dtype))
        whh = whh.at[:H, g * Hp:g * Hp + H].set(p["whh"][g].astype(weight_dtype))
        bih = bih.at[0, g * Hp:g * Hp + H].set(p["bih"][g])
        bhh = bhh.at[0, g * Hp:g * Hp + H].set(p["bhh"][g])

    return {
        "w1": pad2(p["w1"], Dp, Hp, weight_dtype),
        "b1": pad2(p["b1"][None, :], 1, Hp, jnp.float32),
        "wih": wih, "bih": bih,
        "whh": whh, "bhh": bhh,
        "w2": pad2(p["w2"], Hp, Ap, weight_dtype),
        "b2": pad2(p["b2"][None, :], 1, Ap, jnp.float32),
    }


def reference_forward(inputs, hidden_state, p):
    """Pure-JAX f32 reference matching torch.nn.GRUCell semantics (unpadded params)."""
    H = p["w1"].shape[1]
    h = hidden_state.reshape(-1, H)
    x1 = jnp.maximum(inputs @ p["w1"] + p["b1"], 0.0)
    gi = [x1 @ p["wih"][i] + p["bih"][i] for i in range(3)]
    gh = [h @ p["whh"][i] + p["bhh"][i] for i in range(3)]
    r = jax.nn.sigmoid(gi[0] + gh[0])
    z = jax.nn.sigmoid(gi[1] + gh[1])
    n = jnp.tanh(gi[2] + r * gh[2])
    h_new = (1.0 - z) * n + z * h
    q = h_new @ p["w2"] + p["b2"]
    return q, h_new


if __name__ == "__main__":
    batch = 4
    input_shape = 48
    n_actions = 6
    hidden_dim = 64
    T = 8

    key = jax.random.PRNGKey(0)
    k_params, k_x, k_h, k_seq = jax.random.split(key, 4)
    params = init_params(k_params, input_shape, n_actions, hidden_dim)
    padded = pad_params(params)   # bf16 weights -> tolerances loosened vs f32 reference

    inputs = jax.random.normal(k_x, (batch, input_shape), jnp.float32)
    hidden0 = jax.random.normal(k_h, (batch, hidden_dim), jnp.float32)

    # --- single step (module forward semantics) ---
    q, h = rnn_agent_step(inputs, hidden0, padded,
                          hidden_dim=hidden_dim, n_actions=n_actions)
    q = jax.block_until_ready(q)
    h = jax.block_until_ready(h)
    q_ref, h_ref = reference_forward(inputs, hidden0, params)
    assert q.shape == (batch, n_actions) and h.shape == (batch, hidden_dim)
    assert jnp.allclose(q, q_ref, atol=3e-2, rtol=3e-2)
    assert jnp.allclose(h, h_ref, atol=3e-2, rtol=3e-2)

    # --- padded-h carry across two steps (no re-pad/slice of h between calls) ---
    q1, h1_pad = rnn_agent_step(inputs, hidden0, padded, hidden_dim=hidden_dim,
                                n_actions=n_actions, return_padded_h=True)
    q2, h2 = rnn_agent_step(inputs, h1_pad, padded,
                            hidden_dim=hidden_dim, n_actions=n_actions)
    q2 = jax.block_until_ready(q2)
    _, h1_ref = reference_forward(inputs, hidden0, params)
    q2_ref, h2_ref = reference_forward(inputs, h1_ref, params)
    assert jnp.allclose(q2, q2_ref, atol=5e-2, rtol=5e-2)
    assert jnp.allclose(h2, h2_ref, atol=5e-2, rtol=5e-2)

    # --- fused T-step rollout in one pallas_call (h carried in VMEM scratch) ---
    x_seq = jax.random.normal(k_seq, (T, batch, input_shape), jnp.float32)
    q_seq, h_T = rnn_agent_rollout(x_seq, hidden0, padded,
                                   hidden_dim=hidden_dim, n_actions=n_actions)
    q_seq = jax.block_until_ready(q_seq)
    h_T = jax.block_until_ready(h_T)

    h_r = hidden0
    q_refs = []
    for t in range(T):
        q_r, h_r = reference_forward(x_seq[t], h_r, params)
        q_refs.append(q_r)
    q_seq_ref = jnp.stack(q_refs)
    assert q_seq.shape == (T, batch, n_actions) and h_T.shape == (batch, hidden_dim)
    # bf16-weight error compounds slightly over T steps.
    assert jnp.allclose(q_seq, q_seq_ref, atol=1e-1, rtol=5e-2)
    assert jnp.allclose(h_T, h_r, atol=1e-1, rtol=5e-2)

    print("KERNEL_OK")
</pallas_src>

<mosaic_0001>
module attributes {stable_mosaic.version = 11 : i64} {
  func.func @rnn_agent_kernel(%arg0: i32, %arg1: i32, %arg2: memref<1x8x128xf32, #tpu.memory_space<vmem>>, %arg3: memref<8x128xf32, #tpu.memory_space<vmem>>, %arg4: memref<128x128xbf16, #tpu.memory_space<vmem>>, %arg5: memref<1x128xf32, #tpu.memory_space<vmem>>, %arg6: memref<128x384xbf16, #tpu.memory_space<vmem>>, %arg7: memref<1x384xf32, #tpu.memory_space<vmem>>, %arg8: memref<128x384xbf16, #tpu.memory_space<vmem>>, %arg9: memref<1x384xf32, #tpu.memory_space<vmem>>, %arg10: memref<128x128xbf16, #tpu.memory_space<vmem>>, %arg11: memref<1x128xf32, #tpu.memory_space<vmem>>, %arg12: memref<1x8x128xf32, #tpu.memory_space<vmem>>, %arg13: memref<8x128xf32, #tpu.memory_space<vmem>>, %arg14: memref<8x128xf32, #tpu.memory_space<vmem>>) attributes {dimension_semantics = [#tpu.dimension_semantics<parallel>, #tpu.dimension_semantics<arbitrary>], iteration_bounds = array<i64: 1, 1>, scalar_prefetch = 0 : i64, scratch_operands = 1 : i64, tpu.core_type = #tpu.core_type<tc>, window_params = [{transform_indices = @transform_0, window_bounds = array<i64: 1, 8, 128>}, {transform_indices = @transform_1, window_bounds = array<i64: 8, 128>}, {pipeline_mode = #tpu.pipeline_mode<synchronous>, transform_indices = @transform_2, window_bounds = array<i64: 128, 128>}, {pipeline_mode = #tpu.pipeline_mode<synchronous>, transform_indices = @transform_3, window_bounds = array<i64: 1, 128>}, {pipeline_mode = #tpu.pipeline_mode<synchronous>, transform_indices = @transform_4, window_bounds = array<i64: 128, 384>}, {pipeline_mode = #tpu.pipeline_mode<synchronous>, transform_indices = @transform_5, window_bounds = array<i64: 1, 384>}, {pipeline_mode = #tpu.pipeline_mode<synchronous>, transform_indices = @transform_6, window_bounds = array<i64: 128, 384>}, {pipeline_mode = #tpu.pipeline_mode<synchronous>, transform_indices = @transform_7, window_bounds = array<i64: 1, 384>}, {pipeline_mode = #tpu.pipeline_mode<synchronous>, transform_indices = @transform_8, window_bounds = array<i64: 128, 128>}, {pipeline_mode = #tpu.pipeline_mode<synchronous>, transform_indices = @transform_9, window_bounds = array<i64: 1, 128>}, {transform_indices = @transform_10, window_bounds = array<i64: 1, 8, 128>}, {transform_indices = @transform_11, window_bounds = array<i64: 8, 128>}]} {
    %c0_i32 = arith.constant 0 : i32
    %0 = arith.cmpi eq, %arg1, %c0_i32 : i32
    %1 = arith.extui %0 : i1 to i32
    %c0_i32_0 = arith.constant 0 : i32
    %2 = arith.cmpi ne, %1, %c0_i32_0 : i32
    scf.if %2 {
      %c0_35 = arith.constant 0 : index
      %c0_36 = arith.constant 0 : index
      %65 = vector.load %arg3[%c0_35, %c0_36] : memref<8x128xf32, #tpu.memory_space<vmem>>, vector<8x128xf32>
      %c0_37 = arith.constant 0 : index
      %c0_38 = arith.constant 0 : index
      %66 = vector.load %arg14[%c0_37, %c0_38] : memref<8x128xf32, #tpu.memory_space<vmem>>, vector<8x128xf32>
      tpu.vector_store %arg14[%c0_37, %c0_38], %65 {strides = array<i32>} : memref<8x128xf32, #tpu.memory_space<vmem>>, vector<8x128xf32>,
    } else {
    }
    %c0 = arith.constant 0 : index
    %c0_1 = arith.constant 0 : index
    %c0_2 = arith.constant 0 : index
    %3 = vector.load %arg2[%c0, %c0_1, %c0_2] : memref<1x8x128xf32, #tpu.memory_space<vmem>>, vector<1x8x128xf32>
    %4 = vector.shape_cast %3 : vector<1x8x128xf32> to vector<8x128xf32>
    %c0_3 = arith.constant 0 : index
    %c0_4 = arith.constant 0 : index
    %5 = vector.load %arg14[%c0_3, %c0_4] : memref<8x128xf32, #tpu.memory_space<vmem>>, vector<8x128xf32>
    %6 = arith.truncf %4 : vector<8x128xf32> to vector<8x128xbf16>
    %c0_5 = arith.constant 0 : index
    %c0_6 = arith.constant 0 : index
    %7 = vector.load %arg4[%c0_5, %c0_6] : memref<128x128xbf16, #tpu.memory_space<vmem>>, vector<128x128xbf16>
    %cst = arith.constant dense<0.000000e+00> : vector<8x128xf32>
    %8 = tpu.matmul %6, %7, %cst {dimension_numbers = #tpu.dot_dimension_numbers<[1], [0], [0], [1], [0, 0, 1, 1], [], []>} : vector<8x128xbf16>, vector<128x128xbf16>, vector<8x128xf32> -> vector<8x128xf32>
    %c0_7 = arith.constant 0 : index
    %c0_8 = arith.constant 0 : index
    %9 = vector.load %arg5[%c0_7, %c0_8] : memref<1x128xf32, #tpu.memory_space<vmem>>, vector<1x128xf32>
    %10 = vector.broadcast %9 : vector<1x128xf32> to vector<8x128xf32>
    %11 = arith.addf %8, %10 : vector<8x128xf32>
    %cst_9 = arith.constant 0.000000e+00 : f32
    %12 = vector.broadcast %cst_9 : f32 to vector<8x128xf32>
    %13 = arith.maximumf %11, %12 : vector<8x128xf32>
    %14 = arith.truncf %13 : vector<8x128xf32> to vector<8x128xbf16>
    %c0_10 = arith.constant 0 : index
    %c0_11 = arith.constant 0 : index
    %15 = vector.load %arg6[%c0_10, %c0_11] : memref<128x384xbf16, #tpu.memory_space<vmem>>, vector<128x384xbf16>
    %cst_12 = arith.constant dense<0.000000e+00> : vector<8x384xf32>
    %16 = tpu.matmul %14, %15, %cst_12 {dimension_numbers = #tpu.dot_dimension_numbers<[1], [0], [0], [1], [0, 0, 1, 1], [], []>} : vector<8x128xbf16>, vector<128x384xbf16>, vector<8x384xf32> -> vector<8x384xf32>
    %c0_13 = arith.constant 0 : index
    %c0_14 = arith.constant 0 : index
    %17 = vector.load %arg7[%c0_13, %c0_14] : memref<1x384xf32, #tpu.memory_space<vmem>>, vector<1x384xf32>
    %18 = vector.broadcast %17 : vector<1x384xf32> to vector<8x384xf32>
    %19 = arith.addf %16, %18 : vector<8x384xf32>
    %20 = arith.truncf %5 : vector<8x128xf32> to vector<8x128xbf16>
    %c0_15 = arith.constant 0 : index
    %c0_16 = arith.constant 0 : index
    %21 = vector.load %arg8[%c0_15, %c0_16] : memref<128x384xbf16, #tpu.memory_space<vmem>>, vector<128x384xbf16>
    %cst_17 = arith.constant dense<0.000000e+00> : vector<8x384xf32>
    %22 = tpu.matmul %20, %21, %cst_17 {dimension_numbers = #tpu.dot_dimension_numbers<[1], [0], [0], [1], [0, 0, 1, 1], [], []>} : vector<8x128xbf16>, vector<128x384xbf16>, vector<8x384xf32> -> vector<8x384xf32>
    %c0_18 = arith.constant 0 : index
    %c0_19 = arith.constant 0 : index
    %23 = vector.load %arg9[%c0_18, %c0_19] : memref<1x384xf32, #tpu.memory_space<vmem>>, vector<1x384xf32>
    %24 = vector.broadcast %23 : vector<1x384xf32> to vector<8x384xf32>
    %25 = arith.addf %22, %24 : vector<8x384xf32>
    %26 = vector.extract_strided_slice %19 {offsets = [0, 0], sizes = [8, 128], strides = [1, 1]} : vector<8x384xf32> to vector<8x128xf32>
    %27 = vector.extract_strided_slice %25 {offsets = [0, 0], sizes = [8, 128], strides = [1, 1]} : vector<8x384xf32> to vector<8x128xf32>
    %28 = arith.addf %26, %27 : vector<8x128xf32>
    %29 = arith.negf %28 : vector<8x128xf32>
    %30 = math.exp %29 : vector<8x128xf32>
    %cst_20 = arith.constant 1.000000e+00 : f32
    %31 = vector.broadcast %cst_20 : f32 to vector<8x128xf32>
    %32 = arith.addf %31, %30 : vector<8x128xf32>
    %33 = arith.divf %31, %32 : vector<8x128xf32>
    %34 = vector.extract_strided_slice %19 {offsets = [0, 128], sizes = [8, 128], strides = [1, 1]} : vector<8x384xf32> to vector<8x128xf32>
    %35 = vector.extract_strided_slice %25 {offsets = [0, 128], sizes = [8, 128], strides = [1, 1]} : vector<8x384xf32> to vector<8x128xf32>
    %36 = arith.addf %34, %35 : vector<8x128xf32>
    %37 = arith.negf %36 : vector<8x128xf32>
    %38 = math.exp %37 : vector<8x128xf32>
    %cst_21 = arith.constant 1.000000e+00 : f32
    %39 = vector.broadcast %cst_21 : f32 to vector<8x128xf32>
    %40 = arith.addf %39, %38 : vector<8x128xf32>
    %41 = arith.divf %39, %40 : vector<8x128xf32>
    %42 = vector.extract_strided_slice %19 {offsets = [0, 256], sizes = [8, 128], strides = [1, 1]} : vector<8x384xf32> to vector<8x128xf32>
    %43 = vector.extract_strided_slice %25 {offsets = [0, 256], sizes = [8, 128], strides = [1, 1]} : vector<8x384xf32> to vector<8x128xf32>
    %44 = arith.mulf %33, %43 : vector<8x128xf32>
    %45 = arith.addf %42, %44 : vector<8x128xf32>
    %46 = math.tanh %45 : vector<8x128xf32>
    %cst_22 = arith.constant 1.000000e+00 : f32
    %47 = vector.broadcast %cst_22 : f32 to vector<8x128xf32>
    %48 = arith.subf %47, %41 : vector<8x128xf32>
    %49 = arith.mulf %48, %46 : vector<8x128xf32>
    %50 = arith.mulf %41, %5 : vector<8x128xf32>
    %51 = arith.addf %49, %50 : vector<8x128xf32>
    %52 = arith.truncf %51 : vector<8x128xf32> to vector<8x128xbf16>
    %c0_23 = arith.constant 0 : index
    %c0_24 = arith.constant 0 : index
    %53 = vector.load %arg10[%c0_23, %c0_24] : memref<128x128xbf16, #tpu.memory_space<vmem>>, vector<128x128xbf16>
    %cst_25 = arith.constant dense<0.000000e+00> : vector<8x128xf32>
    %54 = tpu.matmul %52, %53, %cst_25 {dimension_numbers = #tpu.dot_dimension_numbers<[1], [0], [0], [1], [0, 0, 1, 1], [], []>} : vector<8x128xbf16>, vector<128x128xbf16>, vector<8x128xf32> -> vector<8x128xf32>
    %c0_26 = arith.constant 0 : index
    %c0_27 = arith.constant 0 : index
    %55 = vector.load %arg11[%c0_26, %c0_27] : memref<1x128xf32, #tpu.memory_space<vmem>>, vector<1x128xf32>
    %56 = vector.broadcast %55 : vector<1x128xf32> to vector<8x128xf32>
    %57 = arith.addf %54, %56 : vector<8x128xf32>
    %c0_28 = arith.constant 0 : index
    %c0_29 = arith.constant 0 : index
    %c0_30 = arith.constant 0 : index
    %58 = vector.load %arg12[%c0_28, %c0_29, %c0_30] : memref<1x8x128xf32, #tpu.memory_space<vmem>>, vector<1x8x128xf32>
    %59 = vector.shape_cast %58 : vector<1x8x128xf32> to vector<8x128xf32>
    %60 = vector.shape_cast %57 : vector<8x128xf32> to vector<1x8x128xf32>
    tpu.vector_store %arg12[%c0_28, %c0_29, %c0_30], %60 {strides = array<i32>} : memref<1x8x128xf32, #tpu.memory_space<vmem>>, vector<1x8x128xf32>,
    %c0_31 = arith.constant 0 : index
    %c0_32 = arith.constant 0 : index
    %61 = vector.load %arg14[%c0_31, %c0_32] : memref<8x128xf32, #tpu.memory_space<vmem>>, vector<8x128xf32>
    tpu.vector_store %arg14[%c0_31, %c0_32], %51 {strides = array<i32>} : memref<8x128xf32, #tpu.memory_space<vmem>>, vector<8x128xf32>,
    %c0_i32_33 = arith.constant 0 : i32
    %62 = arith.cmpi eq, %arg1, %c0_i32_33 : i32
    %63 = arith.extui %62 : i1 to i32
    %c0_i32_34 = arith.constant 0 : i32
    %64 = arith.cmpi ne, %63, %c0_i32_34 : i32
    scf.if %64 {
      %c0_35 = arith.constant 0 : index
      %c0_36 = arith.constant 0 : index
      %65 = vector.load %arg13[%c0_35, %c0_36] : memref<8x128xf32, #tpu.memory_space<vmem>>, vector<8x128xf32>
      tpu.vector_store %arg13[%c0_35, %c0_36], %51 {strides = array<i32>} : memref<8x128xf32, #tpu.memory_space<vmem>>, vector<8x128xf32>,
    } else {
    }
    return
  }
  func.func @transform_0(%arg0: i32, %arg1: i32) -> (i32, i32, i32) {
    %c0_i32 = arith.constant 0 : i32
    %c0_i32_0 = arith.constant 0 : i32
    return %arg1, %arg0, %c0_i32 : i32, i32, i32
  }
  func.func @transform_1(%arg0: i32, %arg1: i32) -> (i32, i32) {
    %c0_i32 = arith.constant 0 : i32
    %c0_i32_0 = arith.constant 0 : i32
    return %arg0, %c0_i32 : i32, i32
  }
  func.func @transform_2(%arg0: i32, %arg1: i32) -> (i32, i32) {
    %c0_i32 = arith.constant 0 : i32
    %c0_i32_0 = arith.constant 0 : i32
    %c0_i32_1 = arith.constant 0 : i32
    return %c0_i32, %c0_i32_0 : i32, i32
  }
  func.func @transform_3(%arg0: i32, %arg1: i32) -> (i32, i32) {
    %c0_i32 = arith.constant 0 : i32
    %c0_i32_0 = arith.constant 0 : i32
    %c0_i32_1 = arith.constant 0 : i32
    return %c0_i32, %c0_i32_0 : i32, i32
  }
  func.func @transform_4(%arg0: i32, %arg1: i32) -> (i32, i32) {
    %c0_i32 = arith.constant 0 : i32
    %c0_i32_0 = arith.constant 0 : i32
    %c0_i32_1 = arith.constant 0 : i32
    return %c0_i32, %c0_i32_0 : i32, i32
  }
  func.func @transform_5(%arg0: i32, %arg1: i32) -> (i32, i32) {
    %c0_i32 = arith.constant 0 : i32
    %c0_i32_0 = arith.constant 0 : i32
    %c0_i32_1 = arith.constant 0 : i32
    return %c0_i32, %c0_i32_0 : i32, i32
  }
  func.func @transform_6(%arg0: i32, %arg1: i32) -> (i32, i32) {
    %c0_i32 = arith.constant 0 : i32
    %c0_i32_0 = arith.constant 0 : i32
    %c0_i32_1 = arith.constant 0 : i32
    return %c0_i32, %c0_i32_0 : i32, i32
  }
  func.func @transform_7(%arg0: i32, %arg1: i32) -> (i32, i32) {
    %c0_i32 = arith.constant 0 : i32
    %c0_i32_0 = arith.constant 0 : i32
    %c0_i32_1 = arith.constant 0 : i32
    return %c0_i32, %c0_i32_0 : i32, i32
  }
  func.func @transform_8(%arg0: i32, %arg1: i32) -> (i32, i32) {
    %c0_i32 = arith.constant 0 : i32
    %c0_i32_0 = arith.constant 0 : i32
    %c0_i32_1 = arith.constant 0 : i32
    return %c0_i32, %c0_i32_0 : i32, i32
  }
  func.func @transform_9(%arg0: i32, %arg1: i32) -> (i32, i32) {
    %c0_i32 = arith.constant 0 : i32
    %c0_i32_0 = arith.constant 0 : i32
    %c0_i32_1 = arith.constant 0 : i32
    return %c0_i32, %c0_i32_0 : i32, i32
  }
  func.func @transform_10(%arg0: i32, %arg1: i32) -> (i32, i32, i32) {
    %c0_i32 = arith.constant 0 : i32
    %c0_i32_0 = arith.constant 0 : i32
    return %arg1, %arg0, %c0_i32 : i32, i32, i32
  }
  func.func @transform_11(%arg0: i32, %arg1: i32) -> (i32, i32) {
    %c0_i32 = arith.constant 0 : i32
    %c0_i32_0 = arith.constant 0 : i32
    return %arg0, %c0_i32 : i32, i32
  }
}

</mosaic_0001>

<llo_original>
// kernel: rnn_agent_step.1
$region0: #{rnn_agent_step.1}
  #allocation0 [shape = 'u32[]', space=smem, size = 0x4, offset = 0x4, fixed_abs, tag = 'smem constant byte address 0x4 - core index']
  #allocation1 [shape = 'u32[144,128]{1,0:T(1,128)}', space=vmem, size = 0x12000, scoped, tag = 'internal scratch']
  #allocation2 [shape = 'f32[8,128]{1,0:T(8,128)}', space=vmem, size = 0x1000, scoped, tag = 'scratch operand']
  %s0 = inlined_call_operand.vmem [shape: f32[1,8,128], index: 0, kind: input, shape index: {}]
  %s1 = inlined_call_operand.vmem [shape: f32[8,128], index: 1, kind: input, shape index: {}]
  %s2 = inlined_call_operand.hbm [shape: bf16[128,128], index: 2, kind: input, shape index: {}]
  %s3 = inlined_call_operand.vmem [shape: f32[1,128], index: 3, kind: input, shape index: {}]
  %s4 = inlined_call_operand.hbm [shape: bf16[128,384], index: 4, kind: input, shape index: {}]
  %s5 = inlined_call_operand.vmem [shape: f32[1,384], index: 5, kind: input, shape index: {}]
  %s6 = inlined_call_operand.hbm [shape: bf16[128,384], index: 6, kind: input, shape index: {}]
  %s7 = inlined_call_operand.vmem [shape: f32[1,384], index: 7, kind: input, shape index: {}]
  %s8 = inlined_call_operand.hbm [shape: bf16[128,128], index: 8, kind: input, shape index: {}]
  %s9 = inlined_call_operand.vmem [shape: f32[1,128], index: 9, kind: input, shape index: {}]
  %s10 = inlined_call_operand.vmem [shape: f32[1,8,128], index: 10, kind: output, shape index: {0}]
  %s11 = inlined_call_operand.vmem [shape: f32[8,128], index: 11, kind: output, shape index: {1}]
  %12 = xla_tuple %s10, %s11
  %s13 = sld [smem:[#allocation0]]
  $region82: #{rnn_agent_step.1} parent=0
    _
  %s15 = ssub.s32 1, %s13
  %s16 = scalar_select 0, %s15, %s13
  $region1: #{rnn_agent_step.1} parent=0
    #allocation3 [shape = 'u8[32768]{0}', space=vmem, size = 0x8000, scoped, tag = 'input window, operand 2, single buffered']
    #allocation4 [shape = 's32[1]{0}', space=sflag, size = 0x4, scoped, tag = 'scoped memory for rnn_agent_step.1']
    #allocation5 [shape = 'u8[98304]{0}', space=vmem, size = 0x18000, scoped, tag = 'input window, operand 4, single buffered']
    #allocation6 [shape = 's32[1]{0}', space=sflag, size = 0x4, scoped, tag = 'scoped memory for rnn_agent_step.1']
    #allocation7 [shape = 'u8[98304]{0}', space=vmem, size = 0x18000, scoped, tag = 'input window, operand 6, single buffered']
    #allocation8 [shape = 'u8[32768]{0}', space=vmem, size = 0x8000, scoped, tag = 'input window, operand 8, single buffered']
    #allocation9 [shape = 's32[1]{0}', space=sflag, size = 0x4, scoped, tag = 'scoped memory for rnn_agent_step.1']
    %17 = vsyncpa [#allocation4], 0
    %18 = vsyncpa [#allocation6], 0
    %19 = vsyncpa [#allocation9], 0
    // Predicated region
    $region2: #{rnn_agent_step.1} parent=1 // pred_check
      _
    $region3: #{rnn_agent_step.1} parent=1 // pred_check_branch
      %21 = sbr.rel (0) target = $region5
    $region4: #{rnn_agent_step.1} parent=1 // pred_region
      _
    $region5: #{rnn_agent_step.1} parent=1 // pred_fallthru
      _
    // Predicated region
    $region6: #{rnn_agent_step.1} parent=1 // pred_check
      _
    $region7: #{rnn_agent_step.1} parent=1 // pred_check_branch
      %23 = sbr.rel (0) target = $region9
    $region8: #{rnn_agent_step.1} parent=1 // pred_region
      _
    $region9: #{rnn_agent_step.1} parent=1 // pred_fallthru
      _
    // Predicated region
    $region10: #{rnn_agent_step.1} parent=1 // pred_check
      _
    $region11: #{rnn_agent_step.1} parent=1 // pred_check_branch
      %25 = sbr.rel (0) target = $region13
    $region12: #{rnn_agent_step.1} parent=1 // pred_region
      %s27 = ssub.s32 1024, 1024
      %28 = vsyncadd [#allocation4], %s27
      %s29 = sshll.u32 [#allocation3], 4
      %s30 = int_to_ptr.vmem [resolvable:$true] %s29
      %35 = dma.hbm_to_vmem [thread:$0]  %s2, 1024, %s30, [#allocation4], 64, 64, 4
    $region13: #{rnn_agent_step.1} parent=1 // pred_fallthru
      _
    // Predicated region
    $region14: #{rnn_agent_step.1} parent=1 // pred_check
      _
    $region15: #{rnn_agent_step.1} parent=1 // pred_check_branch
      %37 = sbr.rel (0) target = $region17
    $region16: #{rnn_agent_step.1} parent=1 // pred_region
      _
    $region17: #{rnn_agent_step.1} parent=1 // pred_fallthru
      _
    // Predicated region
    $region18: #{rnn_agent_step.1} parent=1 // pred_check
      _
    $region19: #{rnn_agent_step.1} parent=1 // pred_check_branch
      %39 = sbr.rel (0) target = $region21
    $region20: #{rnn_agent_step.1} parent=1 // pred_region
      %s41 = ssub.s32 3072, 3072
      %42 = vsyncadd [#allocation6], %s41
      %s43 = sshll.u32 [#allocation5], 4
      %s44 = int_to_ptr.vmem [resolvable:$true] %s43
      %49 = dma.hbm_to_vmem [thread:$0]  %s4, 3072, %s44, [#allocation6], 192, 192, 12
    $region21: #{rnn_agent_step.1} parent=1 // pred_fallthru
      _
    // Predicated region
    $region22: #{rnn_agent_step.1} parent=1 // pred_check
      _
    $region23: #{rnn_agent_step.1} parent=1 // pred_check_branch
      %51 = sbr.rel (0) target = $region25
    $region24: #{rnn_agent_step.1} parent=1 // pred_region
      _
    $region25: #{rnn_agent_step.1} parent=1 // pred_fallthru
      _
    // Predicated region
    $region26: #{rnn_agent_step.1} parent=1 // pred_check
      _
    $region27: #{rnn_agent_step.1} parent=1 // pred_check_branch
      %53 = sbr.rel (0) target = $region29
    $region28: #{rnn_agent_step.1} parent=1 // pred_region
      %s55 = ssub.s32 3072, 3072
      %56 = vsyncadd [#allocation6], %s55
      %s57 = sshll.u32 [#allocation7], 4
      %s58 = int_to_ptr.vmem [resolvable:$true] %s57
      %63 = dma.hbm_to_vmem [thread:$0]  %s6, 3072, %s58, [#allocation6], 192, 192, 12
    $region29: #{rnn_agent_step.1} parent=1 // pred_fallthru
      _
    // Predicated region
    $region30: #{rnn_agent_step.1} parent=1 // pred_check
      _
    $region31: #{rnn_agent_step.1} parent=1 // pred_check_branch
      %65 = sbr.rel (0) target = $region33
    $region32: #{rnn_agent_step.1} parent=1 // pred_region
      _
    $region33: #{rnn_agent_step.1} parent=1 // pred_fallthru
      _
    // Predicated region
    $region34: #{rnn_agent_step.1} parent=1 // pred_check
      _
    $region35: #{rnn_agent_step.1} parent=1 // pred_check_branch
      %67 = sbr.rel (0) target = $region37
    $region36: #{rnn_agent_step.1} parent=1 // pred_region
      %s69 = ssub.s32 1024, 1024
      %70 = vsyncadd [#allocation9], %s69
      %s71 = sshll.u32 [#allocation8], 4
      %s72 = int_to_ptr.vmem [resolvable:$true] %s71
      %77 = dma.hbm_to_vmem [thread:$0]  %s8, 1024, %s72, [#allocation9], 64, 64, 4
    $region37: #{rnn_agent_step.1} parent=1 // pred_fallthru
      _
    // Predicated region
    $region38: #{rnn_agent_step.1} parent=1 // pred_check
      _
    $region39: #{rnn_agent_step.1} parent=1 // pred_check_branch
      %79 = sbr.rel (0) target = $region41
    $region40: #{rnn_agent_step.1} parent=1 // pred_region
      _
    $region41: #{rnn_agent_step.1} parent=1 // pred_fallthru
      _
    // Predicated region
    $region42: #{rnn_agent_step.1} parent=1 // pred_check
      _
    $region43: #{rnn_agent_step.1} parent=1 // pred_check_branch
      %81 = sbr.rel (0) target = $region45
    $region44: #{rnn_agent_step.1} parent=1 // pred_region
      %82 = dma.done [#allocation4], 1024
    $region45: #{rnn_agent_step.1} parent=1 // pred_fallthru
      _
    // Predicated region
    $region46: #{rnn_agent_step.1} parent=1 // pred_check
      _
    $region47: #{rnn_agent_step.1} parent=1 // pred_check_branch
      %84 = sbr.rel (0) target = $region49
    $region48: #{rnn_agent_step.1} parent=1 // pred_region
      %85 = dma.done [#allocation6], 3072
    $region49: #{rnn_agent_step.1} parent=1 // pred_fallthru
      _
    // Predicated region
    $region50: #{rnn_agent_step.1} parent=1 // pred_check
      _
    $region51: #{rnn_agent_step.1} parent=1 // pred_check_branch
      %87 = sbr.rel (0) target = $region53
    $region52: #{rnn_agent_step.1} parent=1 // pred_region
      %88 = dma.done [#allocation6], 3072
    $region53: #{rnn_agent_step.1} parent=1 // pred_fallthru
      _
    // Predicated region
    $region54: #{rnn_agent_step.1} parent=1 // pred_check
      _
    $region55: #{rnn_agent_step.1} parent=1 // pred_check_branch
      %90 = sbr.rel (0) target = $region57
    $region56: #{rnn_agent_step.1} parent=1 // pred_region
      %91 = dma.done [#allocation9], 1024
    $region57: #{rnn_agent_step.1} parent=1 // pred_fallthru
      _
    %p93 = scmp.eq.s32.totalorder 0, 0
    // Predicated region
    $region58: #{rnn_agent_step.1} parent=1 // pred_check
      %p94 = pneg %p93
    $region59: #{rnn_agent_step.1} parent=1 // pred_check_branch
      %96 = sbr.rel (%p94) target = $region61
    $region60: #{rnn_agent_step.1} parent=1 // pred_region
      %v97 = vld [vmem:[%s1] sm:$0xff]
      %98 = vst [vmem:[#allocation2] sm:$0xff] %v97
    $region61: #{rnn_agent_step.1} parent=1 // pred_fallthru
      _
    %v99 = vld [vmem:[%s0] sm:$0xff]
    %v100 = vld [vmem:[#allocation2] sm:$0xff]
    %v101 = vpack.c.bf16 %v99, %v99
    %v102 = vld [vmem:[#allocation3] sm:$0xf]
    %v103 = vld [vmem:[#allocation3 + $0x4] sm:$0xf]
    %v104 = vld [vmem:[#allocation3 + $0x8] sm:$0xf]
    %v105 = vld [vmem:[#allocation3 + $0xc] sm:$0xf]
    %v106 = vld [vmem:[#allocation3 + $0x10] sm:$0xf]
    %v107 = vld [vmem:[#allocation3 + $0x14] sm:$0xf]
    %v108 = vld [vmem:[#allocation3 + $0x18] sm:$0xf]
    %v109 = vld [vmem:[#allocation3 + $0x1c] sm:$0xf]
    %v110 = vld [vmem:[#allocation3 + $0x20] sm:$0xf]
    %v111 = vld [vmem:[#allocation3 + $0x24] sm:$0xf]
    %v112 = vld [vmem:[#allocation3 + $0x28] sm:$0xf]
    %v113 = vld [vmem:[#allocation3 + $0x2c] sm:$0xf]
    %v114 = vld [vmem:[#allocation3 + $0x30] sm:$0xf]
    %v115 = vld [vmem:[#allocation3 + $0x34] sm:$0xf]
    %v116 = vld [vmem:[#allocation3 + $0x38] sm:$0xf]
    %v117 = vld [vmem:[#allocation3 + $0x3c] sm:$0xf]
    %v118 = vld [vmem:[%s3] sm:$0x1]
    %v120 = vlaneseq
    %v121 = vshrl.u32 %v120, 7
    %v122 = vsub.s32 0, %v121
    %v123 = vrot.slane %v118, %v122
    %v141 = vunpack.c.l.b16 %v102
    %v142 = vunpack.c.l.b16 %v103
    %v143 = vunpack.c.l.b16 %v104
    %v144 = vunpack.c.l.b16 %v105
    %v145 = vunpack.c.l.b16 %v106
    %v146 = vunpack.c.l.b16 %v107
    %v147 = vunpack.c.l.b16 %v108
    %v148 = vunpack.c.l.b16 %v109
    %v149 = vunpack.c.l.b16 %v110
    %v150 = vunpack.c.l.b16 %v111
    %v151 = vunpack.c.l.b16 %v112
    %v152 = vunpack.c.l.b16 %v113
    %v153 = vunpack.c.l.b16 %v114
    %v154 = vunpack.c.l.b16 %v115
    %v155 = vunpack.c.l.b16 %v116
    %v156 = vunpack.c.l.b16 %v117
    %v157 = vpack.c.b16 %v142, %v141
    %v158 = vpack.c.b16 %v144, %v143
    %v159 = vpack.c.b16 %v146, %v145
    %v160 = vpack.c.b16 %v148, %v147
    %v161 = vpack.c.b16 %v150, %v149
    %v162 = vpack.c.b16 %v152, %v151
    %v163 = vpack.c.b16 %v154, %v153
    %v164 = vpack.c.b16 %v156, %v155
    %173 = vmatprep.subr.bf16.mxu0 0
    %174 = vmatpush1.bf16.msra.mxu0 %v157
    %175 = vmatprep.subr.bf16.mxu0 0
    %176 = vmatpush1.bf16.msra.mxu0 %v158
    %177 = vmatprep.subr.bf16.mxu0 0
    %178 = vmatpush1.bf16.msra.mxu0 %v159
    %179 = vmatprep.subr.bf16.mxu0 0
    %180 = vmatpush1.bf16.msra.mxu0 %v160
    %181 = vmatprep.subr.bf16.mxu0 0
    %182 = vmatpush1.bf16.msra.mxu0 %v161
    %183 = vmatprep.subr.bf16.mxu0 0
    %184 = vmatpush1.bf16.msra.mxu0 %v162
    %185 = vmatprep.subr.bf16.mxu0 0
    %186 = vmatpush1.bf16.msra.mxu0 %v163
    %187 = vmatprep.subr.bf16.mxu0 0
    %188 = vmatpush1.bf16.msra.mxu0 %v164
    %189 = vmatprep.subr.bf16.mxu0 0
    %190 = vmatpush1.bf16.msra.mxu0 0
    %191 = vmatprep.subr.bf16.mxu0 0
    %192 = vmatpush1.bf16.msra.mxu0 0
    %193 = vmatprep.subr.bf16.mxu0 0
    %194 = vmatpush1.bf16.msra.mxu0 0
    %195 = vmatprep.subr.bf16.mxu0 0
    %196 = vmatpush1.bf16.msra.mxu0 0
    %197 = vmatprep.subr.bf16.mxu0 0
    %198 = vmatpush1.bf16.msra.mxu0 0
    %199 = vmatprep.subr.bf16.mxu0 0
    %200 = vmatpush1.bf16.msra.mxu0 0
    %201 = vmatprep.subr.bf16.mxu0 0
    %202 = vmatpush1.bf16.msra.mxu0 0
    %203 = vmatprep.subr.bf16.mxu0 0
    %204 = vmatpush1.bf16.msra.mxu0 0
    %205 = vmatprep.mubr.bf16.mxu0 0
    %206 = vmatmul.mubr.bf16.gmra.mrb[0].mxu0 %v101
    %v207 = vpop.f32.mrb[0].mxu0
    %v208 = vadd.f32 %v123, %v207
    %v209 = vpop.f32.mrb[0].mxu0
    %v210 = vpop.f32.mrb[0].mxu0
    %v211 = vpop.f32.mrb[0].mxu0
    %212 = vdwg.mxu0
    %v213 = vmax.f32 %v208, 0.0
    %v214 = vpack.c.bf16 %v213, %v213
    %v215 = vld [vmem:[#allocation5] sm:$0xff]
    %v216 = vld [vmem:[#allocation5 + $0x8] sm:$0xf]
    %v217 = vld [vmem:[#allocation5 + $0xc] sm:$0xff]
    %v218 = vld [vmem:[#allocation5 + $0x14] sm:$0xf]
    %v219 = vld [vmem:[#allocation5 + $0x18] sm:$0xff]
    %v220 = vld [vmem:[#allocation5 + $0x20] sm:$0xf]
    %v221 = vld [vmem:[#allocation5 + $0x24] sm:$0xff]
    %v222 = vld [vmem:[#allocation5 + $0x2c] sm:$0xf]
    %v223 = vld [vmem:[#allocation5 + $0x30] sm:$0xff]
    %v224 = vld [vmem:[#allocation5 + $0x38] sm:$0xf]
    %v225 = vld [vmem:[#allocation5 + $0x3c] sm:$0xff]
    %v226 = vld [vmem:[#allocation5 + $0x44] sm:$0xf]
    %v227 = vld [vmem:[#allocation5 + $0x48] sm:$0xff]
    %v228 = vld [vmem:[#allocation5 + $0x50] sm:$0xf]
    %v229 = vld [vmem:[#allocation5 + $0x54] sm:$0xff]
    %v230 = vld [vmem:[#allocation5 + $0x5c] sm:$0xf]
    %v231 = vld [vmem:[#allocation5 + $0x60] sm:$0xff]
    %v232 = vld [vmem:[#allocation5 + $0x68] sm:$0xf]
    %v233 = vld [vmem:[#allocation5 + $0x6c] sm:$0xff]
    %v234 = vld [vmem:[#allocation5 + $0x74] sm:$0xf]
    %v235 = vld [vmem:[#allocation5 + $0x78] sm:$0xff]
    %v236 = vld [vmem:[#allocation5 + $0x80] sm:$0xf]
    %v237 = vld [vmem:[#allocation5 + $0x84] sm:$0xff]
    %v238 = vld [vmem:[#allocation5 + $0x8c] sm:$0xf]
    %v239 = vld [vmem:[#allocation5 + $0x90] sm:$0xff]
    %v240 = vld [vmem:[#allocation5 + $0x98] sm:$0xf]
    %v241 = vld [vmem:[#allocation5 + $0x9c] sm:$0xff]
    %v242 = vld [vmem:[#allocation5 + $0xa4] sm:$0xf]
    %v243 = vld [vmem:[#allocation5 + $0xa8] sm:$0xff]
    %v244 = vld [vmem:[#allocation5 + $0xb0] sm:$0xf]
    %v245 = vld [vmem:[#allocation5 + $0xb4] sm:$0xff]
    %v246 = vld [vmem:[#allocation5 + $0xbc] sm:$0xf]
    %v247 = vld [vmem:[%s5] sm:$0x7]
    %v249 = vlaneseq
    %v250 = vshrl.u32 %v249, 7
    %v251 = vsub.s32 0, %v250
    %v252 = vrot.slane %v247, %v251
    %v253 = vlaneseq
    %v254 = vshrl.u32 %v253, 7
    %v255 = vsub.s32 1, %v254
    %v256 = vrot.slane %v247, %v255
    %v257 = vlaneseq
    %v258 = vshrl.u32 %v257, 7
    %v259 = vsub.s32 2, %v258
    %v260 = vrot.slane %v247, %v259
    %v296 = vunpack.c.l.b16 %v215
    %v297 = vunpack.c.h.b16 %v215
    %v298 = vunpack.c.l.b16 %v216
    %v299 = vunpack.c.l.b16 %v217
    %v300 = vunpack.c.h.b16 %v217
    %v301 = vunpack.c.l.b16 %v218
    %v302 = vunpack.c.l.b16 %v219
    %v303 = vunpack.c.h.b16 %v219
    %v304 = vunpack.c.l.b16 %v220
    %v305 = vunpack.c.l.b16 %v221
    %v306 = vunpack.c.h.b16 %v221
    %v307 = vunpack.c.l.b16 %v222
    %v308 = vunpack.c.l.b16 %v223
    %v309 = vunpack.c.h.b16 %v223
    %v310 = vunpack.c.l.b16 %v224
    %v311 = vunpack.c.l.b16 %v225
    %v312 = vunpack.c.h.b16 %v225
    %v313 = vunpack.c.l.b16 %v226
    %v314 = vunpack.c.l.b16 %v227
    %v315 = vunpack.c.h.b16 %v227
    %v316 = vunpack.c.l.b16 %v228
    %v317 = vunpack.c.l.b16 %v229
    %v318 = vunpack.c.h.b16 %v229
    %v319 = vunpack.c.l.b16 %v230
    %v320 = vunpack.c.l.b16 %v231
    %v321 = vunpack.c.h.b16 %v231
    %v322 = vunpack.c.l.b16 %v232
    %v323 = vunpack.c.l.b16 %v233
    %v324 = vunpack.c.h.b16 %v233
    %v325 = vunpack.c.l.b16 %v234
    %v326 = vunpack.c.l.b16 %v235
    %v327 = vunpack.c.h.b16 %v235
    %v328 = vunpack.c.l.b16 %v236
    %v329 = vunpack.c.l.b16 %v237
    %v330 = vunpack.c.h.b16 %v237
    %v331 = vunpack.c.l.b16 %v238
    %v332 = vunpack.c.l.b16 %v239
    %v333 = vunpack.c.h.b16 %v239
    %v334 = vunpack.c.l.b16 %v240
    %v335 = vunpack.c.l.b16 %v241
    %v336 = vunpack.c.h.b16 %v241
    %v337 = vunpack.c.l.b16 %v242
    %v338 = vunpack.c.l.b16 %v243
    %v339 = vunpack.c.h.b16 %v243
    %v340 = vunpack.c.l.b16 %v244
    %v341 = vunpack.c.l.b16 %v245
    %v342 = vunpack.c.h.b16 %v245
    %v343 = vunpack.c.l.b16 %v246
    %v344 = vpack.c.b16 %v299, %v296
    %v345 = vpack.c.b16 %v300, %v297
    %v346 = vpack.c.b16 %v301, %v298
    %v347 = vpack.c.b16 %v305, %v302
    %v348 = vpack.c.b16 %v306, %v303
    %v349 = vpack.c.b16 %v307, %v304
    %v350 = vpack.c.b16 %v311, %v308
    %v351 = vpack.c.b16 %v312, %v309
    %v352 = vpack.c.b16 %v313, %v310
    %v353 = vpack.c.b16 %v317, %v314
    %v354 = vpack.c.b16 %v318, %v315
    %v355 = vpack.c.b16 %v319, %v316
    %v356 = vpack.c.b16 %v323, %v320
    %v357 = vpack.c.b16 %v324, %v321
    %v358 = vpack.c.b16 %v325, %v322
    %v359 = vpack.c.b16 %v329, %v326
    %v360 = vpack.c.b16 %v330, %v327
    %v361 = vpack.c.b16 %v331, %v328
    %v362 = vpack.c.b16 %v335, %v332
    %v363 = vpack.c.b16 %v336, %v333
    %v364 = vpack.c.b16 %v337, %v334
    %v365 = vpack.c.b16 %v341, %v338
    %v366 = vpack.c.b16 %v342, %v339
    %v367 = vpack.c.b16 %v343, %v340
    %392 = vmatprep.subr.bf16.mxu0 %v345
    %393 = vmatpush1.bf16.msra.mxu0 %v344
    %394 = vmatprep.subr.bf16.mxu0 %v348
    %395 = vmatpush1.bf16.msra.mxu0 %v347
    %396 = vmatprep.subr.bf16.mxu0 %v351
    %397 = vmatpush1.bf16.msra.mxu0 %v350
    %398 = vmatprep.subr.bf16.mxu0 %v354
    %399 = vmatpush1.bf16.msra.mxu0 %v353
    %400 = vmatprep.subr.bf16.mxu0 %v357
    %401 = vmatpush1.bf16.msra.mxu0 %v356
    %402 = vmatprep.subr.bf16.mxu0 %v360
    %403 = vmatpush1.bf16.msra.mxu0 %v359
    %404 = vmatprep.subr.bf16.mxu0 %v363
    %405 = vmatpush1.bf16.msra.mxu0 %v362
    %406 = vmatprep.subr.bf16.mxu0 %v366
    %407 = vmatpush1.bf16.msra.mxu0 %v365
    %408 = vmatprep.subr.bf16.mxu0 0
    %409 = vmatpush1.bf16.msra.mxu0 0
    %410 = vmatprep.subr.bf16.mxu0 0
    %411 = vmatpush1.bf16.msra.mxu0 0
    %412 = vmatprep.subr.bf16.mxu0 0
    %413 = vmatpush1.bf16.msra.mxu0 0
    %414 = vmatprep.subr.bf16.mxu0 0
    %415 = vmatpush1.bf16.msra.mxu0 0
    %416 = vmatprep.subr.bf16.mxu0 0
    %417 = vmatpush1.bf16.msra.mxu0 0
    %418 = vmatprep.subr.bf16.mxu0 0
    %419 = vmatpush1.bf16.msra.mxu0 0
    %420 = vmatprep.subr.bf16.mxu0 0
    %421 = vmatpush1.bf16.msra.mxu0 0
    %422 = vmatprep.subr.bf16.mxu0 0
    %423 = vmatpush1.bf16.msra.mxu0 0
    %424 = vmatprep.mubr.bf16.mxu0 0
    %425 = vmatmul.mubr.bf16.gmra.mrb[0].mxu0 %v214
    %v426 = vpop.f32.mrb[0].mxu0
    %v427 = vadd.f32 %v252, %v426
    %v428 = vpop.f32.mrb[0].mxu0
    %v429 = vadd.f32 %v256, %v428
    %v430 = vpop.f32.mrb[0].mxu0
    %v431 = vpop.f32.mrb[0].mxu0
    %432 = vdwg.mxu0
    %433 = vmatprep.subr.bf16.mxu0 0
    %434 = vmatpush1.bf16.msra.mxu0 %v346
    %435 = vmatprep.subr.bf16.mxu0 0
    %436 = vmatpush1.bf16.msra.mxu0 %v349
    %437 = vmatprep.subr.bf16.mxu0 0
    %438 = vmatpush1.bf16.msra.mxu0 %v352
    %439 = vmatprep.subr.bf16.mxu0 0
    %440 = vmatpush1.bf16.msra.mxu0 %v355
    %441 = vmatprep.subr.bf16.mxu0 0
    %442 = vmatpush1.bf16.msra.mxu0 %v358
    %443 = vmatprep.subr.bf16.mxu0 0
    %444 = vmatpush1.bf16.msra.mxu0 %v361
    %445 = vmatprep.subr.bf16.mxu0 0
    %446 = vmatpush1.bf16.msra.mxu0 %v364
    %447 = vmatprep.subr.bf16.mxu0 0
    %448 = vmatpush1.bf16.msra.mxu0 %v367
    %449 = vmatprep.subr.bf16.mxu0 0
    %450 = vmatpush1.bf16.msra.mxu0 0
    %451 = vmatprep.subr.bf16.mxu0 0
    %452 = vmatpush1.bf16.msra.mxu0 0
    %453 = vmatprep.subr.bf16.mxu0 0
    %454 = vmatpush1.bf16.msra.mxu0 0
    %455 = vmatprep.subr.bf16.mxu0 0
    %456 = vmatpush1.bf16.msra.mxu0 0
    %457 = vmatprep.subr.bf16.mxu0 0
    %458 = vmatpush1.bf16.msra.mxu0 0
    %459 = vmatprep.subr.bf16.mxu0 0
    %460 = vmatpush1.bf16.msra.mxu0 0
    %461 = vmatprep.subr.bf16.mxu0 0
    %462 = vmatpush1.bf16.msra.mxu0 0
    %463 = vmatprep.subr.bf16.mxu0 0
    %464 = vmatpush1.bf16.msra.mxu0 0
    %465 = vmatprep.mubr.bf16.mxu0 0
    %466 = vmatmul.mubr.bf16.gmra.mrb[0].mxu0 %v214
    %v467 = vpop.f32.mrb[0].mxu0
    %v468 = vadd.f32 %v260, %v467
    %v469 = vpop.f32.mrb[0].mxu0
    %v470 = vpop.f32.mrb[0].mxu0
    %v471 = vpop.f32.mrb[0].mxu0
    %472 = vdwg.mxu0
    %v473 = vpack.c.bf16 %v100, %v100
    %v474 = vld [vmem:[#allocation7] sm:$0xff]
    %v475 = vld [vmem:[#allocation7 + $0x8] sm:$0xf]
    %v476 = vld [vmem:[#allocation7 + $0xc] sm:$0xff]
    %v477 = vld [vmem:[#allocation7 + $0x14] sm:$0xf]
    %v478 = vld [vmem:[#allocation7 + $0x18] sm:$0xff]
    %v479 = vld [vmem:[#allocation7 + $0x20] sm:$0xf]
    %v480 = vld [vmem:[#allocation7 + $0x24] sm:$0xff]
    %v481 = vld [vmem:[#allocation7 + $0x2c] sm:$0xf]
    %v482 = vld [vmem:[#allocation7 + $0x30] sm:$0xff]
    %v483 = vld [vmem:[#allocation7 + $0x38] sm:$0xf]
    %v484 = vld [vmem:[#allocation7 + $0x3c] sm:$0xff]
    %v485 = vld [vmem:[#allocation7 + $0x44] sm:$0xf]
    %v486 = vld [vmem:[#allocation7 + $0x48] sm:$0xff]
    %v487 = vld [vmem:[#allocation7 + $0x50] sm:$0xf]
    %v488 = vld [vmem:[#allocation7 + $0x54] sm:$0xff]
    %v489 = vld [vmem:[#allocation7 + $0x5c] sm:$0xf]
    %v490 = vld [vmem:[#allocation7 + $0x60] sm:$0xff]
    %v491 = vld [vmem:[#allocation7 + $0x68] sm:$0xf]
    %v492 = vld [vmem:[#allocation7 + $0x6c] sm:$0xff]
    %v493 = vld [vmem:[#allocation7 + $0x74] sm:$0xf]
    %v494 = vld [vmem:[#allocation7 + $0x78] sm:$0xff]
    %v495 = vld [vmem:[#allocation7 + $0x80] sm:$0xf]
    %v496 = vld [vmem:[#allocation7 + $0x84] sm:$0xff]
    %v497 = vld [vmem:[#allocation7 + $0x8c] sm:$0xf]
    %v498 = vld [vmem:[#allocation7 + $0x90] sm:$0xff]
    %v499 = vld [vmem:[#allocation7 + $0x98] sm:$0xf]
    %v500 = vld [vmem:[#allocation7 + $0x9c] sm:$0xff]
    %v501 = vld [vmem:[#allocation7 + $0xa4] sm:$0xf]
    %v502 = vld [vmem:[#allocation7 + $0xa8] sm:$0xff]
    %v503 = vld [vmem:[#allocation7 + $0xb0] sm:$0xf]
    %v504 = vld [vmem:[#allocation7 + $0xb4] sm:$0xff]
    %v505 = vld [vmem:[#allocation7 + $0xbc] sm:$0xf]
    %v506 = vld [vmem:[%s7] sm:$0x7]
    %v508 = vlaneseq
    %v509 = vshrl.u32 %v508, 7
    %v510 = vsub.s32 0, %v509
    %v511 = vrot.slane %v506, %v510
    %v512 = vlaneseq
    %v513 = vshrl.u32 %v512, 7
    %v514 = vsub.s32 1, %v513
    %v515 = vrot.slane %v506, %v514
    %v516 = vlaneseq
    %v517 = vshrl.u32 %v516, 7
    %v518 = vsub.s32 2, %v517
    %v519 = vrot.slane %v506, %v518
    %v555 = vunpack.c.l.b16 %v474
    %v556 = vunpack.c.h.b16 %v474
    %v557 = vunpack.c.l.b16 %v475
    %v558 = vunpack.c.l.b16 %v476
    %v559 = vunpack.c.h.b16 %v476
    %v560 = vunpack.c.l.b16 %v477
    %v561 = vunpack.c.l.b16 %v478
    %v562 = vunpack.c.h.b16 %v478
    %v563 = vunpack.c.l.b16 %v479
    %v564 = vunpack.c.l.b16 %v480
    %v565 = vunpack.c.h.b16 %v480
    %v566 = vunpack.c.l.b16 %v481
    %v567 = vunpack.c.l.b16 %v482
    %v568 = vunpack.c.h.b16 %v482
    %v569 = vunpack.c.l.b16 %v483
    %v570 = vunpack.c.l.b16 %v484
    %v571 = vunpack.c.h.b16 %v484
    %v572 = vunpack.c.l.b16 %v485
    %v573 = vunpack.c.l.b16 %v486
    %v574 = vunpack.c.h.b16 %v486
    %v575 = vunpack.c.l.b16 %v487
    %v576 = vunpack.c.l.b16 %v488
    %v577 = vunpack.c.h.b16 %v488
    %v578 = vunpack.c.l.b16 %v489
    %v579 = vunpack.c.l.b16 %v490
    %v580 = vunpack.c.h.b16 %v490
    %v581 = vunpack.c.l.b16 %v491
    %v582 = vunpack.c.l.b16 %v492
    %v583 = vunpack.c.h.b16 %v492
    %v584 = vunpack.c.l.b16 %v493
    %v585 = vunpack.c.l.b16 %v494
    %v586 = vunpack.c.h.b16 %v494
    %v587 = vunpack.c.l.b16 %v495
    %v588 = vunpack.c.l.b16 %v496
    %v589 = vunpack.c.h.b16 %v496
    %v590 = vunpack.c.l.b16 %v497
    %v591 = vunpack.c.l.b16 %v498
    %v592 = vunpack.c.h.b16 %v498
    %v593 = vunpack.c.l.b16 %v499
    %v594 = vunpack.c.l.b16 %v500
    %v595 = vunpack.c.h.b16 %v500
    %v596 = vunpack.c.l.b16 %v501
    %v597 = vunpack.c.l.b16 %v502
    %v598 = vunpack.c.h.b16 %v502
    %v599 = vunpack.c.l.b16 %v503
    %v600 = vunpack.c.l.b16 %v504
    %v601 = vunpack.c.h.b16 %v504
    %v602 = vunpack.c.l.b16 %v505
    %v603 = vpack.c.b16 %v558, %v555
    %v604 = vpack.c.b16 %v559, %v556
    %v605 = vpack.c.b16 %v560, %v557
    %v606 = vpack.c.b16 %v564, %v561
    %v607 = vpack.c.b16 %v565, %v562
    %v608 = vpack.c.b16 %v566, %v563
    %v609 = vpack.c.b16 %v570, %v567
    %v610 = vpack.c.b16 %v571, %v568
    %v611 = vpack.c.b16 %v572, %v569
    %v612 = vpack.c.b16 %v576, %v573
    %v613 = vpack.c.b16 %v577, %v574
    %v614 = vpack.c.b16 %v578, %v575
    %v615 = vpack.c.b16 %v582, %v579
    %v616 = vpack.c.b16 %v583, %v580
    %v617 = vpack.c.b16 %v584, %v581
    %v618 = vpack.c.b16 %v588, %v585
    %v619 = vpack.c.b16 %v589, %v586
    %v620 = vpack.c.b16 %v590, %v587
    %v621 = vpack.c.b16 %v594, %v591
    %v622 = vpack.c.b16 %v595, %v592
    %v623 = vpack.c.b16 %v596, %v593
    %v624 = vpack.c.b16 %v600, %v597
    %v625 = vpack.c.b16 %v601, %v598
    %v626 = vpack.c.b16 %v602, %v599
    %651 = vmatprep.subr.bf16.mxu0 %v604
    %652 = vmatpush1.bf16.msra.mxu0 %v603
    %653 = vmatprep.subr.bf16.mxu0 %v607
    %654 = vmatpush1.bf16.msra.mxu0 %v606
    %655 = vmatprep.subr.bf16.mxu0 %v610
    %656 = vmatpush1.bf16.msra.mxu0 %v609
    %657 = vmatprep.subr.bf16.mxu0 %v613
    %658 = vmatpush1.bf16.msra.mxu0 %v612
    %659 = vmatprep.subr.bf16.mxu0 %v616
    %660 = vmatpush1.bf16.msra.mxu0 %v615
    %661 = vmatprep.subr.bf16.mxu0 %v619
    %662 = vmatpush1.bf16.msra.mxu0 %v618
    %663 = vmatprep.subr.bf16.mxu0 %v622
    %664 = vmatpush1.bf16.msra.mxu0 %v621
    %665 = vmatprep.subr.bf16.mxu0 %v625
    %666 = vmatpush1.bf16.msra.mxu0 %v624
    %667 = vmatprep.subr.bf16.mxu0 0
    %668 = vmatpush1.bf16.msra.mxu0 0
    %669 = vmatprep.subr.bf16.mxu0 0
    %670 = vmatpush1.bf16.msra.mxu0 0
    %671 = vmatprep.subr.bf16.mxu0 0
    %672 = vmatpush1.bf16.msra.mxu0 0
    %673 = vmatprep.subr.bf16.mxu0 0
    %674 = vmatpush1.bf16.msra.mxu0 0
    %675 = vmatprep.subr.bf16.mxu0 0
    %676 = vmatpush1.bf16.msra.mxu0 0
    %677 = vmatprep.subr.bf16.mxu0 0
    %678 = vmatpush1.bf16.msra.mxu0 0
    %679 = vmatprep.subr.bf16.mxu0 0
    %680 = vmatpush1.bf16.msra.mxu0 0
    %681 = vmatprep.subr.bf16.mxu0 0
    %682 = vmatpush1.bf16.msra.mxu0 0
    %683 = vmatprep.mubr.bf16.mxu0 0
    %684 = vmatmul.mubr.bf16.gmra.mrb[0].mxu0 %v473
    %v685 = vpop.f32.mrb[0].mxu0
    %v686 = vadd.f32 %v511, %v685
    %v687 = vpop.f32.mrb[0].mxu0
    %v688 = vadd.f32 %v515, %v687
    %v689 = vpop.f32.mrb[0].mxu0
    %v690 = vpop.f32.mrb[0].mxu0
    %691 = vdwg.mxu0
    %692 = vmatprep.subr.bf16.mxu0 0
    %693 = vmatpush1.bf16.msra.mxu0 %v605
    %694 = vmatprep.subr.bf16.mxu0 0
    %695 = vmatpush1.bf16.msra.mxu0 %v608
    %696 = vmatprep.subr.bf16.mxu0 0
    %697 = vmatpush1.bf16.msra.mxu0 %v611
    %698 = vmatprep.subr.bf16.mxu0 0
    %699 = vmatpush1.bf16.msra.mxu0 %v614
    %700 = vmatprep.subr.bf16.mxu0 0
    %701 = vmatpush1.bf16.msra.mxu0 %v617
    %702 = vmatprep.subr.bf16.mxu0 0
    %703 = vmatpush1.bf16.msra.mxu0 %v620
    %704 = vmatprep.subr.bf16.mxu0 0
    %705 = vmatpush1.bf16.msra.mxu0 %v623
    %706 = vmatprep.subr.bf16.mxu0 0
    %707 = vmatpush1.bf16.msra.mxu0 %v626
    %708 = vmatprep.subr.bf16.mxu0 0
    %709 = vmatpush1.bf16.msra.mxu0 0
    %710 = vmatprep.subr.bf16.mxu0 0
    %711 = vmatpush1.bf16.msra.mxu0 0
    %712 = vmatprep.subr.bf16.mxu0 0
    %713 = vmatpush1.bf16.msra.mxu0 0
    %714 = vmatprep.subr.bf16.mxu0 0
    %715 = vmatpush1.bf16.msra.mxu0 0
    %716 = vmatprep.subr.bf16.mxu0 0
    %717 = vmatpush1.bf16.msra.mxu0 0
    %718 = vmatprep.subr.bf16.mxu0 0
    %719 = vmatpush1.bf16.msra.mxu0 0
    %720 = vmatprep.subr.bf16.mxu0 0
    %721 = vmatpush1.bf16.msra.mxu0 0
    %722 = vmatprep.subr.bf16.mxu0 0
    %723 = vmatpush1.bf16.msra.mxu0 0
    %724 = vmatprep.mubr.bf16.mxu0 0
    %725 = vmatmul.mubr.bf16.gmra.mrb[0].mxu0 %v473
    %v726 = vpop.f32.mrb[0].mxu0
    %v727 = vadd.f32 %v519, %v726
    %v728 = vpop.f32.mrb[0].mxu0
    %v729 = vpop.f32.mrb[0].mxu0
    %v730 = vpop.f32.mrb[0].mxu0
    %731 = vdwg.mxu0
    %v732 = vadd.f32 %v427, %v686
    %v733 = vxor.u32 %v732, 2147483648
    %v734 = vmul.f32 %v733, 1.442695
    %v735 = vpow.pop %v734
    %v736 = vadd.f32 %v735, 1.0
    %v737 = vrcp.pop %v736
    %v738 = vmul.f32 1.0, %v737
    %v739 = vadd.f32 %v429, %v688
    %v740 = vxor.u32 %v739, 2147483648
    %v741 = vmul.f32 %v740, 1.442695
    %v742 = vpow.pop %v741
    %v743 = vadd.f32 %v742, 1.0
    %v744 = vrcp.pop %v743
    %v745 = vmul.f32 1.0, %v744
    %v746 = vmul.f32 %v738, %v727
    %v747 = vadd.f32 %v468, %v746
    %v748 = vtanh.pop %v747
    %v749 = vsub.f32 1.0, %v745
    %v750 = vmul.f32 %v749, %v748
    %v751 = vmul.f32 %v745, %v100
    %v752 = vadd.f32 %v750, %v751
    %v753 = vpack.c.bf16 %v752, %v752
    %v754 = vld [vmem:[#allocation8] sm:$0xf]
    %v755 = vld [vmem:[#allocation8 + $0x4] sm:$0xf]
    %v756 = vld [vmem:[#allocation8 + $0x8] sm:$0xf]
    %v757 = vld [vmem:[#allocation8 + $0xc] sm:$0xf]
    %v758 = vld [vmem:[#allocation8 + $0x10] sm:$0xf]
    %v759 = vld [vmem:[#allocation8 + $0x14] sm:$0xf]
    %v760 = vld [vmem:[#allocation8 + $0x18] sm:$0xf]
    %v761 = vld [vmem:[#allocation8 + $0x1c] sm:$0xf]
    %v762 = vld [vmem:[#allocation8 + $0x20] sm:$0xf]
    %v763 = vld [vmem:[#allocation8 + $0x24] sm:$0xf]
    %v764 = vld [vmem:[#allocation8 + $0x28] sm:$0xf]
    %v765 = vld [vmem:[#allocation8 + $0x2c] sm:$0xf]
    %v766 = vld [vmem:[#allocation8 + $0x30] sm:$0xf]
    %v767 = vld [vmem:[#allocation8 + $0x34] sm:$0xf]
    %v768 = vld [vmem:[#allocation8 + $0x38] sm:$0xf]
    %v769 = vld [vmem:[#allocation8 + $0x3c] sm:$0xf]
    %v770 = vld [vmem:[%s9] sm:$0x1]
    %v772 = vlaneseq
    %v773 = vshrl.u32 %v772, 7
    %v774 = vsub.s32 0, %v773
    %v775 = vrot.slane %v770, %v774
    %v793 = vunpack.c.l.b16 %v754
    %v794 = vunpack.c.l.b16 %v755
    %v795 = vunpack.c.l.b16 %v756
    %v796 = vunpack.c.l.b16 %v757
    %v797 = vunpack.c.l.b16 %v758
    %v798 = vunpack.c.l.b16 %v759
    %v799 = vunpack.c.l.b16 %v760
    %v800 = vunpack.c.l.b16 %v761
    %v801 = vunpack.c.l.b16 %v762
    %v802 = vunpack.c.l.b16 %v763
    %v803 = vunpack.c.l.b16 %v764
    %v804 = vunpack.c.l.b16 %v765
    %v805 = vunpack.c.l.b16 %v766
    %v806 = vunpack.c.l.b16 %v767
    %v807 = vunpack.c.l.b16 %v768
    %v808 = vunpack.c.l.b16 %v769
    %v809 = vpack.c.b16 %v794, %v793
    %v810 = vpack.c.b16 %v796, %v795
    %v811 = vpack.c.b16 %v798, %v797
    %v812 = vpack.c.b16 %v800, %v799
    %v813 = vpack.c.b16 %v802, %v801
    %v814 = vpack.c.b16 %v804, %v803
    %v815 = vpack.c.b16 %v806, %v805
    %v816 = vpack.c.b16 %v808, %v807
    %825 = vmatprep.subr.bf16.mxu0 0
    %826 = vmatpush1.bf16.msra.mxu0 %v809
    %827 = vmatprep.subr.bf16.mxu0 0
    %828 = vmatpush1.bf16.msra.mxu0 %v810
    %829 = vmatprep.subr.bf16.mxu0 0
    %830 = vmatpush1.bf16.msra.mxu0 %v811
    %831 = vmatprep.subr.bf16.mxu0 0
    %832 = vmatpush1.bf16.msra.mxu0 %v812
    %833 = vmatprep.subr.bf16.mxu0 0
    %834 = vmatpush1.bf16.msra.mxu0 %v813
    %835 = vmatprep.subr.bf16.mxu0 0
    %836 = vmatpush1.bf16.msra.mxu0 %v814
    %837 = vmatprep.subr.bf16.mxu0 0
    %838 = vmatpush1.bf16.msra.mxu0 %v815
    %839 = vmatprep.subr.bf16.mxu0 0
    %840 = vmatpush1.bf16.msra.mxu0 %v816
    %841 = vmatprep.subr.bf16.mxu0 0
    %842 = vmatpush1.bf16.msra.mxu0 0
    %843 = vmatprep.subr.bf16.mxu0 0
    %844 = vmatpush1.bf16.msra.mxu0 0
    %845 = vmatprep.subr.bf16.mxu0 0
    %846 = vmatpush1.bf16.msra.mxu0 0
    %847 = vmatprep.subr.bf16.mxu0 0
    %848 = vmatpush1.bf16.msra.mxu0 0
    %849 = vmatprep.subr.bf16.mxu0 0
    %850 = vmatpush1.bf16.msra.mxu0 0
    %851 = vmatprep.subr.bf16.mxu0 0
    %852 = vmatpush1.bf16.msra.mxu0 0
    %853 = vmatprep.subr.bf16.mxu0 0
    %854 = vmatpush1.bf16.msra.mxu0 0
    %855 = vmatprep.subr.bf16.mxu0 0
    %856 = vmatpush1.bf16.msra.mxu0 0
    %857 = vmatprep.mubr.bf16.mxu0 0
    %858 = vmatmul.mubr.bf16.gmra.mrb[0].mxu0 %v753
    %v859 = vpop.f32.mrb[0].mxu0
    %v860 = vadd.f32 %v775, %v859
    %v861 = vpop.f32.mrb[0].mxu0
    %v862 = vpop.f32.mrb[0].mxu0
    %v863 = vpop.f32.mrb[0].mxu0
    %864 = vdwg.mxu0
    %865 = vst [vmem:[%s10] sm:$0xff] %v860
    %866 = vst [vmem:[#allocation2] sm:$0xff] %v752
    // Predicated region
    $region62: #{rnn_agent_step.1} parent=1 // pred_check
      %p867 = pneg %p93
    $region63: #{rnn_agent_step.1} parent=1 // pred_check_branch
      %869 = sbr.rel (%p867) target = $region65
    $region64: #{rnn_agent_step.1} parent=1 // pred_region
      %870 = vst [vmem:[%s11] sm:$0xff] %v752
    $region65: #{rnn_agent_step.1} parent=1 // pred_fallthru
      _
    // Predicated region
    $region66: #{rnn_agent_step.1} parent=1 // pred_check
      _
    $region67: #{rnn_agent_step.1} parent=1 // pred_check_branch
      %872 = sbr.rel (0) target = $region69
    $region68: #{rnn_agent_step.1} parent=1 // pred_region
      _
    $region69: #{rnn_agent_step.1} parent=1 // pred_fallthru
      _
    // Predicated region
    $region70: #{rnn_agent_step.1} parent=1 // pred_check
      _
    $region71: #{rnn_agent_step.1} parent=1 // pred_check_branch
      %874 = sbr.rel (0) target = $region73
    $region72: #{rnn_agent_step.1} parent=1 // pred_region
      _
    $region73: #{rnn_agent_step.1} parent=1 // pred_fallthru
      _
    // Predicated region
    $region74: #{rnn_agent_step.1} parent=1 // pred_check
      _
    $region75: #{rnn_agent_step.1} parent=1 // pred_check_branch
      %876 = sbr.rel (0) target = $region77
    $region76: #{rnn_agent_step.1} parent=1 // pred_region
      _
    $region77: #{rnn_agent_step.1} parent=1 // pred_fallthru
      _
    // Predicated region
    $region78: #{rnn_agent_step.1} parent=1 // pred_check
      _
    $region79: #{rnn_agent_step.1} parent=1 // pred_check_branch
      %878 = sbr.rel (0) target = $region81
    $region80: #{rnn_agent_step.1} parent=1 // pred_region
      _
    $region81: #{rnn_agent_step.1} parent=1 // pred_fallthru
      _
    %879 = vsyncpa [#allocation4], 1
    %880 = vsyncpa [#allocation6], 1
    %881 = vsyncpa [#allocation9], 1

</llo_original>
